<compile_context>
chip_gen: v7x
topology: tpu7x:2x2x1
jax: 0.10.0
libtpu: 0.0.40
codegen_flags: <defaults>
</compile_context>

<pallas_src>
import functools

import jax
import jax.numpy as jnp
from jax import lax
from jax.experimental import pallas as pl
from jax.experimental.pallas import tpu as pltpu


_NUM_TAPS = 7           # fused tap count = max kernel size (ks = 7)
_HALO = _NUM_TAPS - 1   # 3-sample zero halo on each side of L


def _round_up(x, m):
    return ((x + m - 1) // m) * m


def _msconv_kernel(x_ref, w_ref, b_ref, o_ref, *, length, chunk):
    # x_ref: (1, Cin, L + 6)   bf16  zero-padded input (NCL; L on lanes)
    # w_ref: (7, Cslab, Cin)   bf16  fused per-tap weights for this channel slab
    # b_ref: (Cslab, 1)        f32   fused bias slab
    # o_ref: (1, Cslab, L)     f32   output slab (NCL, lane-dense along L)
    x = x_ref[0]                                   # (Cin, L + 6) bf16, already in VMEM
    bias = b_ref[...]                              # (Cslab, 1) f32
    cslab = o_ref.shape[1]

    # In-kernel L chunking keeps the live f32 accumulator within ~half the vreg file
    # (ceil(Cslab/8) * ceil(chunk/128) vregs) instead of spilling for long sequences.
    for c0 in range(0, length, chunk):
        cw = min(chunk, length - c0)
        acc = jnp.broadcast_to(bias, (cslab, cw))  # bias-initialized f32 accumulator
        for k in range(_NUM_TAPS):                 # 7 MXU matmuls into one shared acc
            # Static lane slice of the resident tile (lane shift, XLU-cheap); no casts here.
            xs = x[:, c0 + k:c0 + k + cw]          # (Cin, cw) bf16
            acc = acc + jnp.dot(w_ref[k], xs, preferred_element_type=jnp.float32)
        o_ref[0, :, c0:c0 + cw] = acc.astype(o_ref.dtype)


def _fuse_params(w1, b1, w2, b2, w3, b3, c3_pad):
    """Fused tap-major weights (7, c3_pad, Cin) bf16 and bias (c3_pad, 1) f32 (NCL orientation)."""
    cp, cin, _ = w1.shape
    w = jnp.zeros((_NUM_TAPS, c3_pad, cin), jnp.float32)
    # Fused tap k multiplies x_pad[:, t + k] (x_pad has a 3-sample left halo), so a branch
    # with kernel size ks / padding p occupies taps k = j + 3 - p, j in [0, ks).
    w = w.at[2:5, 0 * cp:1 * cp, :].set(jnp.transpose(w1, (2, 0, 1)).astype(jnp.float32))
    w = w.at[1:6, 1 * cp:2 * cp, :].set(jnp.transpose(w2, (2, 0, 1)).astype(jnp.float32))
    w = w.at[0:7, 2 * cp:3 * cp, :].set(jnp.transpose(w3, (2, 0, 1)).astype(jnp.float32))
    b = jnp.zeros((c3_pad,), jnp.float32)
    b = b.at[:3 * cp].set(jnp.concatenate([b1, b2, b3]).astype(jnp.float32))
    return w.astype(jnp.bfloat16), b.reshape(c3_pad, 1)


def _choose_cslab(c3):
    # One slab for small/medium channel counts; for large c3, tile output channels in
    # 256-row slabs (bounds the per-step weight slab and accumulator height; v7x VMEM).
    if c3 <= 256:
        return c3, c3
    return 256, _round_up(c3, 256)


def _choose_chunk(length, cslab):
    # Budget the accumulator in vregs (lane dim pads to 128): keep
    # ceil(cslab/8) * ceil(chunk/128) around <= 32 vregs.
    sub_tiles = max(1, (cslab + 7) // 8)
    lane_tiles = max(1, 32 // sub_tiles)
    return max(1, min(lane_tiles * 128, length))


@jax.jit
def multi_scale_conv(x_ncl, params):
    """x_ncl: (N, Cin, L) float32 (PyTorch NCL layout). Returns (N, 3*(Cout//3), L) float32."""
    w1, b1, w2, b2, w3, b3 = params
    n, cin, length = x_ncl.shape
    cp = w1.shape[0]
    c3 = 3 * cp

    cslab, c3_pad = _choose_cslab(c3)
    ct = c3_pad // cslab
    chunk = _choose_chunk(length, cslab)

    w_fused, b_fused = _fuse_params(w1, b1, w2, b2, w3, b3, c3_pad)

    # Stay NCL end-to-end: only a 3-sample zero halo on each side of L, cast to bf16 in the
    # wrapper (single fused pad+cast pass; halves x DMA bytes, no in-kernel converts).
    x_pad = jnp.pad(x_ncl, ((0, 0), (0, 0), (3, 3))).astype(jnp.bfloat16)

    # Rough live-VMEM estimate (double-buffered operands) -> scoped-VMEM limit.
    est = 2 * (cin * (length + _HALO) * 2
               + _NUM_TAPS * cslab * cin * 2
               + cslab * 4
               + cslab * length * 4)
    vmem_limit = int(min(96 * 2**20, max(32 * 2**20, 2 * est)))

    kernel = functools.partial(_msconv_kernel, length=length, chunk=chunk)

    out = pl.pallas_call(
        kernel,
        out_shape=jax.ShapeDtypeStruct((n, c3_pad, length), jnp.float32),
        grid_spec=pltpu.PrefetchScalarGridSpec(
            num_scalar_prefetch=0,
            grid=(n, ct),
            in_specs=[
                # x's block index is constant along the channel-slab axis, so the pipeline
                # fetches it once per batch (no halo gather, no layout transpose).
                pl.BlockSpec((1, cin, length + _HALO), lambda b, c: (b, 0, 0)),
                # Grid-invariant along b; follow-up for huge weights on v7x: single-buffer
                # via pipeline_mode=pl.Buffered(1).
                pl.BlockSpec((_NUM_TAPS, cslab, cin), lambda b, c: (0, c, 0)),
                pl.BlockSpec((cslab, 1), lambda b, c: (c, 0)),
            ],
            out_specs=pl.BlockSpec((1, cslab, length), lambda b, c: (b, c, 0)),
        ),
        compiler_params=pltpu.CompilerParams(
            dimension_semantics=("parallel", "parallel"),
            vmem_limit_bytes=vmem_limit,
        ),
    )(x_pad, w_fused, b_fused)

    if c3_pad != c3:
        out = out[:, :c3, :]
    return out


def _reference(x_ncl, params):
    """Pure-JAX reference via lax.conv_general_dilated (matches torch Conv1d)."""
    w1, b1, w2, b2, w3, b3 = params

    def conv(w, b, pad):
        y = lax.conv_general_dilated(
            x_ncl, w, window_strides=(1,), padding=[(pad, pad)],
            dimension_numbers=("NCH", "OIH", "NCH"))
        return y + b[None, :, None]

    return jnp.concatenate(
        [conv(w1, b1, 1), conv(w2, b2, 2), conv(w3, b3, 3)], axis=1)


def init_params(key, in_channels, out_channels):
    cp = out_channels // 3
    ks = jax.random.split(key, 6)
    mk = lambda k, shape: (0.1 * jax.random.normal(k, shape)).astype(jnp.float32)
    w1 = mk(ks[0], (cp, in_channels, 3)); b1 = mk(ks[1], (cp,))
    w2 = mk(ks[2], (cp, in_channels, 5)); b2 = mk(ks[3], (cp,))
    w3 = mk(ks[4], (cp, in_channels, 7)); b3 = mk(ks[5], (cp,))
    return (w1, b1, w2, b2, w3, b3)


if __name__ == "__main__":
    key = jax.random.PRNGKey(0)
    kx, kp = jax.random.split(key)

    N, Cin, L = 2, 4, 16
    out_channels = 12                      # -> 3 branches of 4 channels each
    x = jax.random.normal(kx, (N, Cin, L), dtype=jnp.float32)
    params = init_params(kp, Cin, out_channels)

    out = multi_scale_conv(x, params)
    jax.block_until_ready(out)

    ref = _reference(x, params)
    assert out.shape == (N, 3 * (out_channels // 3), L), out.shape
    # bf16 MXU operands (x and w) -> slightly looser tolerance than a pure-f32 check.
    assert jnp.allclose(out, ref, atol=3e-2, rtol=3e-2), "mismatch vs reference"

    print("KERNEL_OK")
</pallas_src>

<mosaic_0001>
module attributes {stable_mosaic.version = 11 : i64} {
  func.func @_msconv_kernel(%arg0: i32, %arg1: i32, %arg2: memref<1x4x22xbf16, #tpu.memory_space<vmem>>, %arg3: memref<7x12x4xbf16, #tpu.memory_space<vmem>>, %arg4: memref<12x1xf32, #tpu.memory_space<vmem>>, %arg5: memref<1x12x16xf32, #tpu.memory_space<vmem>>) attributes {dimension_semantics = [#tpu.dimension_semantics<parallel>, #tpu.dimension_semantics<parallel>], iteration_bounds = array<i64: 2, 1>, scalar_prefetch = 0 : i64, scratch_operands = 0 : i64, tpu.core_type = #tpu.core_type<tc>, window_params = [{transform_indices = @transform_0, window_bounds = array<i64: 1, 4, 22>}, {transform_indices = @transform_1, window_bounds = array<i64: 7, 12, 4>}, {transform_indices = @transform_2, window_bounds = array<i64: 12, 1>}, {transform_indices = @transform_3, window_bounds = array<i64: 1, 12, 16>}]} {
    %c0 = arith.constant 0 : index
    %c0_0 = arith.constant 0 : index
    %c0_1 = arith.constant 0 : index
    %0 = vector.load %arg2[%c0, %c0_0, %c0_1] : memref<1x4x22xbf16, #tpu.memory_space<vmem>>, vector<1x4x22xbf16>
    %1 = vector.shape_cast %0 : vector<1x4x22xbf16> to vector<4x22xbf16>
    %c0_2 = arith.constant 0 : index
    %c0_3 = arith.constant 0 : index
    %2 = vector.load %arg4[%c0_2, %c0_3] : memref<12x1xf32, #tpu.memory_space<vmem>>, vector<12x1xf32>
    %3 = vector.shape_cast %2 : vector<12x1xf32> to vector<12x1xf32>
    %4 = vector.broadcast %3 : vector<12x1xf32> to vector<12x16xf32>
    %5 = vector.extract_strided_slice %1 {offsets = [0, 0], sizes = [4, 16], strides = [1, 1]} : vector<4x22xbf16> to vector<4x16xbf16>
    %c0_4 = arith.constant 0 : index
    %c0_5 = arith.constant 0 : index
    %c0_6 = arith.constant 0 : index
    %6 = vector.load %arg3[%c0_4, %c0_5, %c0_6] : memref<7x12x4xbf16, #tpu.memory_space<vmem>>, vector<1x12x4xbf16>
    %7 = vector.shape_cast %6 : vector<1x12x4xbf16> to vector<12x4xbf16>
    %cst = arith.constant dense<0.000000e+00> : vector<12x16xf32>
    %8 = tpu.matmul %7, %5, %cst {dimension_numbers = #tpu.dot_dimension_numbers<[1], [0], [0], [1], [0, 0, 1, 1], [], []>} : vector<12x4xbf16>, vector<4x16xbf16>, vector<12x16xf32> -> vector<12x16xf32>
    %9 = arith.addf %4, %8 : vector<12x16xf32>
    %10 = vector.extract_strided_slice %1 {offsets = [0, 1], sizes = [4, 16], strides = [1, 1]} : vector<4x22xbf16> to vector<4x16xbf16>
    %c1 = arith.constant 1 : index
    %c0_7 = arith.constant 0 : index
    %c0_8 = arith.constant 0 : index
    %11 = vector.load %arg3[%c1, %c0_7, %c0_8] : memref<7x12x4xbf16, #tpu.memory_space<vmem>>, vector<1x12x4xbf16>
    %12 = vector.shape_cast %11 : vector<1x12x4xbf16> to vector<12x4xbf16>
    %cst_9 = arith.constant dense<0.000000e+00> : vector<12x16xf32>
    %13 = tpu.matmul %12, %10, %cst_9 {dimension_numbers = #tpu.dot_dimension_numbers<[1], [0], [0], [1], [0, 0, 1, 1], [], []>} : vector<12x4xbf16>, vector<4x16xbf16>, vector<12x16xf32> -> vector<12x16xf32>
    %14 = arith.addf %9, %13 : vector<12x16xf32>
    %15 = vector.extract_strided_slice %1 {offsets = [0, 2], sizes = [4, 16], strides = [1, 1]} : vector<4x22xbf16> to vector<4x16xbf16>
    %c2 = arith.constant 2 : index
    %c0_10 = arith.constant 0 : index
    %c0_11 = arith.constant 0 : index
    %16 = vector.load %arg3[%c2, %c0_10, %c0_11] : memref<7x12x4xbf16, #tpu.memory_space<vmem>>, vector<1x12x4xbf16>
    %17 = vector.shape_cast %16 : vector<1x12x4xbf16> to vector<12x4xbf16>
    %cst_12 = arith.constant dense<0.000000e+00> : vector<12x16xf32>
    %18 = tpu.matmul %17, %15, %cst_12 {dimension_numbers = #tpu.dot_dimension_numbers<[1], [0], [0], [1], [0, 0, 1, 1], [], []>} : vector<12x4xbf16>, vector<4x16xbf16>, vector<12x16xf32> -> vector<12x16xf32>
    %19 = arith.addf %14, %18 : vector<12x16xf32>
    %20 = vector.extract_strided_slice %1 {offsets = [0, 3], sizes = [4, 16], strides = [1, 1]} : vector<4x22xbf16> to vector<4x16xbf16>
    %c3 = arith.constant 3 : index
    %c0_13 = arith.constant 0 : index
    %c0_14 = arith.constant 0 : index
    %21 = vector.load %arg3[%c3, %c0_13, %c0_14] : memref<7x12x4xbf16, #tpu.memory_space<vmem>>, vector<1x12x4xbf16>
    %22 = vector.shape_cast %21 : vector<1x12x4xbf16> to vector<12x4xbf16>
    %cst_15 = arith.constant dense<0.000000e+00> : vector<12x16xf32>
    %23 = tpu.matmul %22, %20, %cst_15 {dimension_numbers = #tpu.dot_dimension_numbers<[1], [0], [0], [1], [0, 0, 1, 1], [], []>} : vector<12x4xbf16>, vector<4x16xbf16>, vector<12x16xf32> -> vector<12x16xf32>
    %24 = arith.addf %19, %23 : vector<12x16xf32>
    %25 = vector.extract_strided_slice %1 {offsets = [0, 4], sizes = [4, 16], strides = [1, 1]} : vector<4x22xbf16> to vector<4x16xbf16>
    %c4 = arith.constant 4 : index
    %c0_16 = arith.constant 0 : index
    %c0_17 = arith.constant 0 : index
    %26 = vector.load %arg3[%c4, %c0_16, %c0_17] : memref<7x12x4xbf16, #tpu.memory_space<vmem>>, vector<1x12x4xbf16>
    %27 = vector.shape_cast %26 : vector<1x12x4xbf16> to vector<12x4xbf16>
    %cst_18 = arith.constant dense<0.000000e+00> : vector<12x16xf32>
    %28 = tpu.matmul %27, %25, %cst_18 {dimension_numbers = #tpu.dot_dimension_numbers<[1], [0], [0], [1], [0, 0, 1, 1], [], []>} : vector<12x4xbf16>, vector<4x16xbf16>, vector<12x16xf32> -> vector<12x16xf32>
    %29 = arith.addf %24, %28 : vector<12x16xf32>
    %30 = vector.extract_strided_slice %1 {offsets = [0, 5], sizes = [4, 16], strides = [1, 1]} : vector<4x22xbf16> to vector<4x16xbf16>
    %c5 = arith.constant 5 : index
    %c0_19 = arith.constant 0 : index
    %c0_20 = arith.constant 0 : index
    %31 = vector.load %arg3[%c5, %c0_19, %c0_20] : memref<7x12x4xbf16, #tpu.memory_space<vmem>>, vector<1x12x4xbf16>
    %32 = vector.shape_cast %31 : vector<1x12x4xbf16> to vector<12x4xbf16>
    %cst_21 = arith.constant dense<0.000000e+00> : vector<12x16xf32>
    %33 = tpu.matmul %32, %30, %cst_21 {dimension_numbers = #tpu.dot_dimension_numbers<[1], [0], [0], [1], [0, 0, 1, 1], [], []>} : vector<12x4xbf16>, vector<4x16xbf16>, vector<12x16xf32> -> vector<12x16xf32>
    %34 = arith.addf %29, %33 : vector<12x16xf32>
    %35 = vector.extract_strided_slice %1 {offsets = [0, 6], sizes = [4, 16], strides = [1, 1]} : vector<4x22xbf16> to vector<4x16xbf16>
    %c6 = arith.constant 6 : index
    %c0_22 = arith.constant 0 : index
    %c0_23 = arith.constant 0 : index
    %36 = vector.load %arg3[%c6, %c0_22, %c0_23] : memref<7x12x4xbf16, #tpu.memory_space<vmem>>, vector<1x12x4xbf16>
    %37 = vector.shape_cast %36 : vector<1x12x4xbf16> to vector<12x4xbf16>
    %cst_24 = arith.constant dense<0.000000e+00> : vector<12x16xf32>
    %38 = tpu.matmul %37, %35, %cst_24 {dimension_numbers = #tpu.dot_dimension_numbers<[1], [0], [0], [1], [0, 0, 1, 1], [], []>} : vector<12x4xbf16>, vector<4x16xbf16>, vector<12x16xf32> -> vector<12x16xf32>
    %39 = arith.addf %34, %38 : vector<12x16xf32>
    %c0_25 = arith.constant 0 : index
    %c0_26 = arith.constant 0 : index
    %c0_27 = arith.constant 0 : index
    %40 = vector.load %arg5[%c0_25, %c0_26, %c0_27] : memref<1x12x16xf32, #tpu.memory_space<vmem>>, vector<1x12x16xf32>
    %41 = vector.shape_cast %40 : vector<1x12x16xf32> to vector<12x16xf32>
    %42 = vector.shape_cast %39 : vector<12x16xf32> to vector<1x12x16xf32>
    tpu.vector_store %arg5[%c0_25, %c0_26, %c0_27], %42 {strides = array<i32>} : memref<1x12x16xf32, #tpu.memory_space<vmem>>, vector<1x12x16xf32>,
    return
  }
  func.func @transform_0(%arg0: i32, %arg1: i32) -> (i32, i32, i32) {
    %c0_i32 = arith.constant 0 : i32
    %c0_i32_0 = arith.constant 0 : i32
    %c0_i32_1 = arith.constant 0 : i32
    return %arg0, %c0_i32, %c0_i32_0 : i32, i32, i32
  }
  func.func @transform_1(%arg0: i32, %arg1: i32) -> (i32, i32, i32) {
    %c0_i32 = arith.constant 0 : i32
    %c0_i32_0 = arith.constant 0 : i32
    %c0_i32_1 = arith.constant 0 : i32
    return %c0_i32, %arg1, %c0_i32_0 : i32, i32, i32
  }
  func.func @transform_2(%arg0: i32, %arg1: i32) -> (i32, i32) {
    %c0_i32 = arith.constant 0 : i32
    %c0_i32_0 = arith.constant 0 : i32
    return %arg1, %c0_i32 : i32, i32
  }
  func.func @transform_3(%arg0: i32, %arg1: i32) -> (i32, i32, i32) {
    %c0_i32 = arith.constant 0 : i32
    %c0_i32_0 = arith.constant 0 : i32
    return %arg0, %arg1, %c0_i32 : i32, i32, i32
  }
}

</mosaic_0001>

<llo_original>
// kernel: multi_scale_conv.1
$region0: #{multi_scale_conv.1}
  #allocation0 [shape = 'u32[]', space=smem, size = 0x4, offset = 0x4, fixed_abs, tag = 'smem constant byte address 0x4 - core index']
  #allocation1 [shape = 'u32[144,128]{1,0:T(1,128)}', space=vmem, size = 0x12000, scoped, tag = 'internal scratch']
  %s0 = inlined_call_operand.vmem [shape: bf16[2,4,22], index: 0, kind: input, shape index: {}]
  %s1 = inlined_call_operand.vmem [shape: bf16[7,12,4], index: 1, kind: input, shape index: {}]
  %s2 = inlined_call_operand.vmem [shape: f32[12,1], index: 2, kind: input, shape index: {}]
  %s3 = inlined_call_operand.vmem [shape: f32[2,12,16], index: 3, kind: output, shape index: {}]
  %s4 = sld [smem:[#allocation0]]
  $region45: #{multi_scale_conv.1} parent=0
    _
  %s6 = ssub.s32 1, %s4
  %s7 = scalar_select 0, %s6, %s4
  loop: start=0, step=1, limit=4
  $region2: #{multi_scale_conv.1} parent=0 // loop_pre_header
    _
  $region3: #{multi_scale_conv.1} parent=0 // loop_header
    %s9 = sphi 0, %s13
    %p10 = scmp.ge.s32.totalorder %s9, 4
    %s16 = sphi 0, %s28
    %s17 = sphi 0, %s24
    %s18 = sphi 0, %s16
    %s19 = sphi 0, %s17
    %s20 = sphi 0, %s18
    %s21 = sphi 0, %s19
    %s31 = sphi 0, %s33
    %s34 = sphi 0, %s31
    %s35 = sphi 0, %s34
    %s51 = sphi 0, %s35
    %s57 = sphi 0, %s59
    %s60 = sphi 0, %s57
    %s61 = sphi 0, %s60
    %s77 = sphi 0, %s61
    %s83 = sphi 0, %s85
    %s86 = sphi 0, %s83
    %s87 = sphi 0, %s86
    %s103 = sphi 0, %s87
    %s111 = sphi 0, %s113
    %s114 = sphi 0, %s111
    %s115 = sphi 0, %s114
    %s131 = sphi 0, %s115
  $region4: #{multi_scale_conv.1} parent=0 // loop_header_branch
    %12 = sbr.rel (%p10) target = $region8
  $region5: #{multi_scale_conv.1} parent=0 // loop_body
    %s14 = ssub.s32 %s9, 1
    %s15 = ssub.s32 %s9, 2
    %s22 = sadd.s32 1, %s17
    %p23 = scmp.ge.s32.totalorder %s22, 1
    %s24 = scalar_select %p23, 0, %s22
    %s25 = sadd.s32 1, %s16
    %s26 = scalar_select %p23, %s25, %s16
    %p27 = scmp.ge.s32.totalorder %s26, 2
    %s28 = scalar_select %p27, 0, %s26
    %s29 = ssub.s32 %s16, %s28
    %p30 = scmp.eq.s32.totalorder %s29, 0
    %s32 = sadd.s32 %s31, 1
    %s33 = scalar_select %p30, %s31, %s32
    %p36 = pneg %p30
    %p37 = scmp.eq.s32.totalorder %s9, 1
    %p38 = por %p36, %p37
    %p39 = scmp.ne.s32.totalorder %s31, %s34
    %p40 = scmp.eq.s32.totalorder %s9, 0
    %p41 = por %p39, %p40
    %p42 = scmp.ne.s32.totalorder %s31, %s34
    %p43 = scmp.eq.s32.totalorder %s14, 1
    %p44 = por %p42, %p43
    %p45 = scmp.ne.s32.totalorder %s34, %s35
    %p46 = scmp.eq.s32.totalorder %s14, 0
    %p47 = por %p45, %p46
    %p48 = scmp.ne.s32.totalorder %s34, %s35
    %p49 = scmp.eq.s32.totalorder %s15, 1
    %p50 = por %p48, %p49
    %p52 = scmp.ne.s32.totalorder %s35, %s51
    %p53 = scmp.eq.s32.totalorder %s15, 0
    %p54 = por %p52, %p53
    %s55 = ssub.s32 %s17, %s24
    %p56 = scmp.eq.s32.totalorder %s55, 0
    %s58 = sadd.s32 %s57, 1
    %s59 = scalar_select %p56, %s57, %s58
    %p62 = pneg %p56
    %p63 = scmp.eq.s32.totalorder %s9, 1
    %p64 = por %p62, %p63
    %p65 = scmp.ne.s32.totalorder %s57, %s60
    %p66 = scmp.eq.s32.totalorder %s9, 0
    %p67 = por %p65, %p66
    %p68 = scmp.ne.s32.totalorder %s57, %s60
    %p69 = scmp.eq.s32.totalorder %s14, 1
    %p70 = por %p68, %p69
    %p71 = scmp.ne.s32.totalorder %s60, %s61
    %p72 = scmp.eq.s32.totalorder %s14, 0
    %p73 = por %p71, %p72
    %p74 = scmp.ne.s32.totalorder %s60, %s61
    %p75 = scmp.eq.s32.totalorder %s15, 1
    %p76 = por %p74, %p75
    %p78 = scmp.ne.s32.totalorder %s61, %s77
    %p79 = scmp.eq.s32.totalorder %s15, 0
    %p80 = por %p78, %p79
    %s81 = ssub.s32 %s17, %s24
    %p82 = scmp.eq.s32.totalorder %s81, 0
    %s84 = sadd.s32 %s83, 1
    %s85 = scalar_select %p82, %s83, %s84
    %p88 = pneg %p82
    %p89 = scmp.eq.s32.totalorder %s9, 1
    %p90 = por %p88, %p89
    %p91 = scmp.ne.s32.totalorder %s83, %s86
    %p92 = scmp.eq.s32.totalorder %s9, 0
    %p93 = por %p91, %p92
    %p94 = scmp.ne.s32.totalorder %s83, %s86
    %p95 = scmp.eq.s32.totalorder %s14, 1
    %p96 = por %p94, %p95
    %p97 = scmp.ne.s32.totalorder %s86, %s87
    %p98 = scmp.eq.s32.totalorder %s14, 0
    %p99 = por %p97, %p98
    %p100 = scmp.ne.s32.totalorder %s86, %s87
    %p101 = scmp.eq.s32.totalorder %s15, 1
    %p102 = por %p100, %p101
    %p104 = scmp.ne.s32.totalorder %s87, %s103
    %p105 = scmp.eq.s32.totalorder %s15, 0
    %p106 = por %p104, %p105
    %s107 = ssub.s32 %s16, %s28
    %s108 = ssub.s32 %s17, %s24
    %s109 = sor.u32 %s107, %s108
    %p110 = scmp.eq.s32.totalorder %s109, 0
    %s112 = sadd.s32 %s111, 1
    %s113 = scalar_select %p110, %s111, %s112
    %p116 = pneg %p110
    %p117 = scmp.eq.s32.totalorder %s9, 1
    %p118 = por %p116, %p117
    %p119 = scmp.ne.s32.totalorder %s111, %s114
    %p120 = scmp.eq.s32.totalorder %s9, 0
    %p121 = por %p119, %p120
    %p122 = scmp.ne.s32.totalorder %s111, %s114
    %p123 = scmp.eq.s32.totalorder %s14, 1
    %p124 = por %p122, %p123
    %p125 = scmp.ne.s32.totalorder %s114, %s115
    %p126 = scmp.eq.s32.totalorder %s14, 0
    %p127 = por %p125, %p126
    %p128 = scmp.ne.s32.totalorder %s114, %s115
    %p129 = scmp.eq.s32.totalorder %s15, 1
    %p130 = por %p128, %p129
    %p132 = scmp.ne.s32.totalorder %s115, %s131
    %p133 = scmp.eq.s32.totalorder %s15, 0
    %p134 = por %p132, %p133
    %p135 = scmp.le.s32.totalorder 1, %s9
    %p136 = scmp.lt.s32.totalorder %s9, 3
    %p137 = pnand %p135, %p136
    %p138 = pneg %p137
    // Predicated region
    $region9: #{multi_scale_conv.1} parent=5 // pred_check
      _
    $region10: #{multi_scale_conv.1} parent=5 // pred_check_branch
      %140 = sbr.rel (%p137) target = $region12
    $region11: #{multi_scale_conv.1} parent=5 // pred_region
      %s141 = ssub.s32 %s9, 1
      // Predicated region
      $region13: #{multi_scale_conv.1} parent=11 // pred_check
        %p142 = pneg %p73
      $region14: #{multi_scale_conv.1} parent=11 // pred_check_branch
        %144 = sbr.rel (%p142) target = $region16
      $region15: #{multi_scale_conv.1} parent=11 // pred_region
        %s145 = smul.u32 2, %s19
        %p146 = scmp.lt.s32.totalorder %s145, 1
        %s147 = scalar_select %p146, %s145, 1
        %s148 = smul.addr %s147, 4
        %s149 = scalar_lea.vmem %s1, %s148
        %s150 = smul.u32 2, %s19
      $region16: #{multi_scale_conv.1} parent=11 // pred_fallthru
        _
      // Predicated region
      $region17: #{multi_scale_conv.1} parent=11 // pred_check
        %p151 = pneg %p99
      $region18: #{multi_scale_conv.1} parent=11 // pred_check_branch
        %153 = sbr.rel (%p151) target = $region20
      $region19: #{multi_scale_conv.1} parent=11 // pred_region
        %s154 = smul.u32 2, %s19
        %p155 = scmp.lt.s32.totalorder %s154, 1
        %s156 = scalar_select %p155, %s154, 1
        %s157 = smul.addr %s156, 8
        %s158 = scalar_lea.vmem %s2, %s157
        %s159 = smul.u32 2, %s19
      $region20: #{multi_scale_conv.1} parent=11 // pred_fallthru
        _
    $region12: #{multi_scale_conv.1} parent=5 // pred_fallthru
      _
    %p160 = scmp.lt.s32.totalorder %s9, 2
    // Predicated region
    $region21: #{multi_scale_conv.1} parent=5 // pred_check
      %p161 = pneg %p160
    $region22: #{multi_scale_conv.1} parent=5 // pred_check_branch
      %163 = sbr.rel (%p161) target = $region24
    $region23: #{multi_scale_conv.1} parent=5 // pred_region
      // Predicated region
      $region25: #{multi_scale_conv.1} parent=23 // pred_check
        %p164 = pneg %p41
      $region26: #{multi_scale_conv.1} parent=23 // pred_check_branch
        %166 = sbr.rel (%p164) target = $region28
      $region27: #{multi_scale_conv.1} parent=23 // pred_region
        %p167 = scmp.lt.s32.totalorder %s16, 1
        %s168 = scalar_select %p167, %s16, 1
        %s169 = smul.addr %s168, 2
        %s170 = scalar_lea.vmem %s0, %s169
      $region28: #{multi_scale_conv.1} parent=23 // pred_fallthru
        _
    $region24: #{multi_scale_conv.1} parent=5 // pred_fallthru
      _
    %p171 = scmp.le.s32.totalorder 1, %s9
    %p172 = scmp.lt.s32.totalorder %s9, 3
    %p173 = pnand %p171, %p172
    %p174 = pneg %p173
    // Predicated region
    $region29: #{multi_scale_conv.1} parent=5 // pred_check
      _
    $region30: #{multi_scale_conv.1} parent=5 // pred_check_branch
      %176 = sbr.rel (%p173) target = $region32
    $region31: #{multi_scale_conv.1} parent=5 // pred_region
      %s177 = ssub.s32 %s9, 1
      %p178 = scmp.lt.s32.totalorder %s18, 1
      %s179 = scalar_select %p178, %s18, 1
      %s180 = smul.addr %s179, 2
      %s181 = scalar_lea.vmem %s0, %s180
      %p182 = pneg %p47
      %p183 = pneg %p44
      %s184 = smul.u32 2, %s19
      %p185 = scmp.lt.s32.totalorder %s184, 1
      %s186 = scalar_select %p185, %s184, 1
      %s187 = smul.addr %s186, 4
      %s188 = scalar_lea.vmem %s1, %s187
      %p189 = pneg %p73
      %p190 = pneg %p70
      %s191 = smul.u32 2, %s19
      %p192 = scmp.lt.s32.totalorder %s191, 1
      %s193 = scalar_select %p192, %s191, 1
      %s194 = smul.addr %s193, 8
      %s195 = scalar_lea.vmem %s2, %s194
      %p196 = pneg %p99
      %p197 = pneg %p96
      %p198 = pneg %p127
      %p199 = pneg %p124
      %s200 = smul.u32 2, %s19
      %p201 = scmp.lt.s32.totalorder %s18, 1
      %s202 = scalar_select %p201, %s18, 1
      %p203 = scmp.lt.s32.totalorder %s200, 1
      %s204 = scalar_select %p203, %s200, 1
      %s205 = smul.addr %s202, 2
      %s206 = sadd.s32 %s204, %s205
      %s207 = smul.addr %s206, 8
      %s208 = scalar_lea.vmem %s3, %s207
      %p209 = scmp.lt.s32.totalorder %s18, 1
      %s210 = scalar_select %p209, %s18, 1
      %s211 = smul.addr %s210, 2
      %s212 = scalar_lea.vmem %s0, %s211
      %s213 = smul.u32 2, %s19
      %p214 = scmp.lt.s32.totalorder %s213, 1
      %s215 = scalar_select %p214, %s213, 1
      %s216 = smul.addr %s215, 4
      %s217 = scalar_lea.vmem %s1, %s216
      %s218 = smul.u32 2, %s19
      %s219 = smul.u32 2, %s19
      %p220 = scmp.lt.s32.totalorder %s219, 1
      %s221 = scalar_select %p220, %s219, 1
      %s222 = smul.addr %s221, 8
      %s223 = scalar_lea.vmem %s2, %s222
      %s224 = smul.u32 2, %s19
      %s225 = smul.u32 2, %s19
      %p226 = scmp.lt.s32.totalorder %s18, 1
      %s227 = scalar_select %p226, %s18, 1
      %p228 = scmp.lt.s32.totalorder %s225, 1
      %s229 = scalar_select %p228, %s225, 1
      %s230 = smul.addr %s227, 2
      %s231 = sadd.s32 %s229, %s230
      %s232 = smul.addr %s231, 8
      %s233 = scalar_lea.vmem %s3, %s232
      %s234 = smul.u32 2, %s19
      %v236 = vld [vmem:[%s212] sm:$0x3]
      %v237 = vld [vmem:[%s223] sm:$0xff]
      %v238 = vld [vmem:[%s223 + $0x8] sm:$0xf]
      %240 = vset.pattern.permute.xlu0 0
      %241 = vperm.xlu0 %240, %v237
      %v242 = vpop.permute.xlu0 %241
      %245 = vset.pattern.permute.xlu0 0
      %246 = vperm.xlu0 %245, %v238
      %v247 = vpop.permute.xlu0 %246
      %v249 = vld [vmem:[%s217] sm:$0xf]
      %v250 = vld [vmem:[%s217 + $0x4] sm:$0x3]
      %v253 = vunpack.c.l.b16 %v249
      %v254 = vunpack.c.l.b16 %v250
      %v255 = vpack.c.b16 %v254, %v253
      %vm256 = vcmask 31744
      %v258 = vsel %vm256, %v255, 0
      %vm260 = vcmask 1041408
      %v262 = vsel %vm260, %v236, 0
      %264 = vmatprep.subr.bf16.mxu0 0
      %265 = vmatpush1.bf16.msra.mxu0 %v262
      %266 = vmatprep.subr.bf16.mxu0 0
      %267 = vmatpush1.bf16.msra.mxu0 0
      %268 = vmatprep.subr.bf16.mxu0 0
      %269 = vmatpush1.bf16.msra.mxu0 0
      %270 = vmatprep.subr.bf16.mxu0 0
      %271 = vmatpush1.bf16.msra.mxu0 0
      %272 = vmatprep.subr.bf16.mxu0 0
      %273 = vmatpush1.bf16.msra.mxu0 0
      %274 = vmatprep.subr.bf16.mxu0 0
      %275 = vmatpush1.bf16.msra.mxu0 0
      %276 = vmatprep.subr.bf16.mxu0 0
      %277 = vmatpush1.bf16.msra.mxu0 0
      %278 = vmatprep.subr.bf16.mxu0 0
      %279 = vmatpush1.bf16.msra.mxu0 0
      %280 = vmatprep.subr.bf16.mxu0 0
      %281 = vmatpush1.bf16.msra.mxu0 0
      %282 = vmatprep.subr.bf16.mxu0 0
      %283 = vmatpush1.bf16.msra.mxu0 0
      %284 = vmatprep.subr.bf16.mxu0 0
      %285 = vmatpush1.bf16.msra.mxu0 0
      %286 = vmatprep.subr.bf16.mxu0 0
      %287 = vmatpush1.bf16.msra.mxu0 0
      %288 = vmatprep.subr.bf16.mxu0 0
      %289 = vmatpush1.bf16.msra.mxu0 0
      %290 = vmatprep.subr.bf16.mxu0 0
      %291 = vmatpush1.bf16.msra.mxu0 0
      %292 = vmatprep.subr.bf16.mxu0 0
      %293 = vmatpush1.bf16.msra.mxu0 0
      %294 = vmatprep.subr.bf16.mxu0 0
      %295 = vmatpush1.bf16.msra.mxu0 0
      %296 = vmatprep.mubr.bf16.mxu0 0
      %297 = vmatmul.mubr.bf16.gmra.mrb[0].mxu0 %v258
      %v298 = vpop.f32.mrb[0].mxu0
      %v299 = vadd.f32 0.0, %v298
      %v300 = vpop.f32.mrb[0].mxu0
      %v301 = vpop.f32.mrb[0].mxu0
      %v302 = vadd.f32 0.0, %v301
      %v303 = vpop.f32.mrb[0].mxu0
      %304 = vdwg.mxu0
      %v305 = vadd.f32 %v242, %v299
      %v306 = vadd.f32 %v247, %v302
      %s307 = scalar_lea.vmem %s217, 8
      %v308 = vld [vmem:[%s307] sm:$0xf]
      %v309 = vld [vmem:[%s307 + $0x4] sm:$0x3]
      %v312 = vunpack.c.l.b16 %v308
      %v313 = vunpack.c.l.b16 %v309
      %v314 = vpack.c.b16 %v313, %v312
      %v317 = vunpack.c.l.s4 1983009808
      %v318 = vunpack.c.0.s8 %v317
      %v319 = vlaneseq
      %v320 = vshrl.u32 %v319, 7
      %v321 = vsub.s32 %v318, %v320
      %v322 = vrot.slane %v236, %v321
      %323 = vrot.lane.b32.xlu0 %v322, 127
      %v324 = vpop.permute.xlu0 %323
      %v326 = vsel %vm256, %v314, 0
      %v329 = vsel %vm260, %v324, 0
      %331 = vmatprep.subr.bf16.mxu0 0
      %332 = vmatpush1.bf16.msra.mxu0 %v329
      %333 = vmatprep.subr.bf16.mxu0 0
      %334 = vmatpush1.bf16.msra.mxu0 0
      %335 = vmatprep.subr.bf16.mxu0 0
      %336 = vmatpush1.bf16.msra.mxu0 0
      %337 = vmatprep.subr.bf16.mxu0 0
      %338 = vmatpush1.bf16.msra.mxu0 0
      %339 = vmatprep.subr.bf16.mxu0 0
      %340 = vmatpush1.bf16.msra.mxu0 0
      %341 = vmatprep.subr.bf16.mxu0 0
      %342 = vmatpush1.bf16.msra.mxu0 0
      %343 = vmatprep.subr.bf16.mxu0 0
      %344 = vmatpush1.bf16.msra.mxu0 0
      %345 = vmatprep.subr.bf16.mxu0 0
      %346 = vmatpush1.bf16.msra.mxu0 0
      %347 = vmatprep.subr.bf16.mxu0 0
      %348 = vmatpush1.bf16.msra.mxu0 0
      %349 = vmatprep.subr.bf16.mxu0 0
      %350 = vmatpush1.bf16.msra.mxu0 0
      %351 = vmatprep.subr.bf16.mxu0 0
      %352 = vmatpush1.bf16.msra.mxu0 0
      %353 = vmatprep.subr.bf16.mxu0 0
      %354 = vmatpush1.bf16.msra.mxu0 0
      %355 = vmatprep.subr.bf16.mxu0 0
      %356 = vmatpush1.bf16.msra.mxu0 0
      %357 = vmatprep.subr.bf16.mxu0 0
      %358 = vmatpush1.bf16.msra.mxu0 0
      %359 = vmatprep.subr.bf16.mxu0 0
      %360 = vmatpush1.bf16.msra.mxu0 0
      %361 = vmatprep.subr.bf16.mxu0 0
      %362 = vmatpush1.bf16.msra.mxu0 0
      %363 = vmatprep.mubr.bf16.mxu0 0
      %364 = vmatmul.mubr.bf16.gmra.mrb[0].mxu0 %v326
      %v365 = vpop.f32.mrb[0].mxu0
      %v366 = vadd.f32 0.0, %v365
      %v367 = vpop.f32.mrb[0].mxu0
      %v368 = vpop.f32.mrb[0].mxu0
      %v369 = vadd.f32 0.0, %v368
      %v370 = vpop.f32.mrb[0].mxu0
      %371 = vdwg.mxu0
      %v372 = vadd.f32 %v305, %v366
      %v373 = vadd.f32 %v306, %v369
      %s374 = scalar_lea.vmem %s217, 16
      %v375 = vld [vmem:[%s374] sm:$0xf]
      %v376 = vld [vmem:[%s374 + $0x4] sm:$0x3]
      %v379 = vunpack.c.l.b16 %v375
      %v380 = vunpack.c.l.b16 %v376
      %v381 = vpack.c.b16 %v380, %v379
      %382 = vrot.lane.b32.xlu0 %v322, 126
      %v383 = vpop.permute.xlu0 %382
      %v385 = vsel %vm256, %v381, 0
      %v388 = vsel %vm260, %v383, 0
      %390 = vmatprep.subr.bf16.mxu0 0
      %391 = vmatpush1.bf16.msra.mxu0 %v388
      %392 = vmatprep.subr.bf16.mxu0 0
      %393 = vmatpush1.bf16.msra.mxu0 0
      %394 = vmatprep.subr.bf16.mxu0 0
      %395 = vmatpush1.bf16.msra.mxu0 0
      %396 = vmatprep.subr.bf16.mxu0 0
      %397 = vmatpush1.bf16.msra.mxu0 0
      %398 = vmatprep.subr.bf16.mxu0 0
      %399 = vmatpush1.bf16.msra.mxu0 0
      %400 = vmatprep.subr.bf16.mxu0 0
      %401 = vmatpush1.bf16.msra.mxu0 0
      %402 = vmatprep.subr.bf16.mxu0 0
      %403 = vmatpush1.bf16.msra.mxu0 0
      %404 = vmatprep.subr.bf16.mxu0 0
      %405 = vmatpush1.bf16.msra.mxu0 0
      %406 = vmatprep.subr.bf16.mxu0 0
      %407 = vmatpush1.bf16.msra.mxu0 0
      %408 = vmatprep.subr.bf16.mxu0 0
      %409 = vmatpush1.bf16.msra.mxu0 0
      %410 = vmatprep.subr.bf16.mxu0 0
      %411 = vmatpush1.bf16.msra.mxu0 0
      %412 = vmatprep.subr.bf16.mxu0 0
      %413 = vmatpush1.bf16.msra.mxu0 0
      %414 = vmatprep.subr.bf16.mxu0 0
      %415 = vmatpush1.bf16.msra.mxu0 0
      %416 = vmatprep.subr.bf16.mxu0 0
      %417 = vmatpush1.bf16.msra.mxu0 0
      %418 = vmatprep.subr.bf16.mxu0 0
      %419 = vmatpush1.bf16.msra.mxu0 0
      %420 = vmatprep.subr.bf16.mxu0 0
      %421 = vmatpush1.bf16.msra.mxu0 0
      %422 = vmatprep.mubr.bf16.mxu0 0
      %423 = vmatmul.mubr.bf16.gmra.mrb[0].mxu0 %v385
      %v424 = vpop.f32.mrb[0].mxu0
      %v425 = vadd.f32 0.0, %v424
      %v426 = vpop.f32.mrb[0].mxu0
      %v427 = vpop.f32.mrb[0].mxu0
      %v428 = vadd.f32 0.0, %v427
      %v429 = vpop.f32.mrb[0].mxu0
      %430 = vdwg.mxu0
      %v431 = vadd.f32 %v372, %v425
      %v432 = vadd.f32 %v373, %v428
      %s433 = scalar_lea.vmem %s217, 24
      %v434 = vld [vmem:[%s433] sm:$0xf]
      %v435 = vld [vmem:[%s433 + $0x4] sm:$0x3]
      %v438 = vunpack.c.l.b16 %v434
      %v439 = vunpack.c.l.b16 %v435
      %v440 = vpack.c.b16 %v439, %v438
      %441 = vrot.lane.b32.xlu0 %v322, 125
      %v442 = vpop.permute.xlu0 %441
      %v444 = vsel %vm256, %v440, 0
      %v447 = vsel %vm260, %v442, 0
      %449 = vmatprep.subr.bf16.mxu0 0
      %450 = vmatpush1.bf16.msra.mxu0 %v447
      %451 = vmatprep.subr.bf16.mxu0 0
      %452 = vmatpush1.bf16.msra.mxu0 0
      %453 = vmatprep.subr.bf16.mxu0 0
      %454 = vmatpush1.bf16.msra.mxu0 0
      %455 = vmatprep.subr.bf16.mxu0 0
      %456 = vmatpush1.bf16.msra.mxu0 0
      %457 = vmatprep.subr.bf16.mxu0 0
      %458 = vmatpush1.bf16.msra.mxu0 0
      %459 = vmatprep.subr.bf16.mxu0 0
      %460 = vmatpush1.bf16.msra.mxu0 0
      %461 = vmatprep.subr.bf16.mxu0 0
      %462 = vmatpush1.bf16.msra.mxu0 0
      %463 = vmatprep.subr.bf16.mxu0 0
      %464 = vmatpush1.bf16.msra.mxu0 0
      %465 = vmatprep.subr.bf16.mxu0 0
      %466 = vmatpush1.bf16.msra.mxu0 0
      %467 = vmatprep.subr.bf16.mxu0 0
      %468 = vmatpush1.bf16.msra.mxu0 0
      %469 = vmatprep.subr.bf16.mxu0 0
      %470 = vmatpush1.bf16.msra.mxu0 0
      %471 = vmatprep.subr.bf16.mxu0 0
      %472 = vmatpush1.bf16.msra.mxu0 0
      %473 = vmatprep.subr.bf16.mxu0 0
      %474 = vmatpush1.bf16.msra.mxu0 0
      %475 = vmatprep.subr.bf16.mxu0 0
      %476 = vmatpush1.bf16.msra.mxu0 0
      %477 = vmatprep.subr.bf16.mxu0 0
      %478 = vmatpush1.bf16.msra.mxu0 0
      %479 = vmatprep.subr.bf16.mxu0 0
      %480 = vmatpush1.bf16.msra.mxu0 0
      %481 = vmatprep.mubr.bf16.mxu0 0
      %482 = vmatmul.mubr.bf16.gmra.mrb[0].mxu0 %v444
      %v483 = vpop.f32.mrb[0].mxu0
      %v484 = vadd.f32 0.0, %v483
      %v485 = vpop.f32.mrb[0].mxu0
      %v486 = vpop.f32.mrb[0].mxu0
      %v487 = vadd.f32 0.0, %v486
      %v488 = vpop.f32.mrb[0].mxu0
      %489 = vdwg.mxu0
      %v490 = vadd.f32 %v431, %v484
      %v491 = vadd.f32 %v432, %v487
      %s492 = scalar_lea.vmem %s217, 32
      %v493 = vld [vmem:[%s492] sm:$0xf]
      %v494 = vld [vmem:[%s492 + $0x4] sm:$0x3]
      %v497 = vunpack.c.l.b16 %v493
      %v498 = vunpack.c.l.b16 %v494
      %v499 = vpack.c.b16 %v498, %v497
      %500 = vrot.lane.b32.xlu0 %v322, 124
      %v501 = vpop.permute.xlu0 %500
      %v503 = vsel %vm256, %v499, 0
      %v506 = vsel %vm260, %v501, 0
      %508 = vmatprep.subr.bf16.mxu0 0
      %509 = vmatpush1.bf16.msra.mxu0 %v506
      %510 = vmatprep.subr.bf16.mxu0 0
      %511 = vmatpush1.bf16.msra.mxu0 0
      %512 = vmatprep.subr.bf16.mxu0 0
      %513 = vmatpush1.bf16.msra.mxu0 0
      %514 = vmatprep.subr.bf16.mxu0 0
      %515 = vmatpush1.bf16.msra.mxu0 0
      %516 = vmatprep.subr.bf16.mxu0 0
      %517 = vmatpush1.bf16.msra.mxu0 0
      %518 = vmatprep.subr.bf16.mxu0 0
      %519 = vmatpush1.bf16.msra.mxu0 0
      %520 = vmatprep.subr.bf16.mxu0 0
      %521 = vmatpush1.bf16.msra.mxu0 0
      %522 = vmatprep.subr.bf16.mxu0 0
      %523 = vmatpush1.bf16.msra.mxu0 0
      %524 = vmatprep.subr.bf16.mxu0 0
      %525 = vmatpush1.bf16.msra.mxu0 0
      %526 = vmatprep.subr.bf16.mxu0 0
      %527 = vmatpush1.bf16.msra.mxu0 0
      %528 = vmatprep.subr.bf16.mxu0 0
      %529 = vmatpush1.bf16.msra.mxu0 0
      %530 = vmatprep.subr.bf16.mxu0 0
      %531 = vmatpush1.bf16.msra.mxu0 0
      %532 = vmatprep.subr.bf16.mxu0 0
      %533 = vmatpush1.bf16.msra.mxu0 0
      %534 = vmatprep.subr.bf16.mxu0 0
      %535 = vmatpush1.bf16.msra.mxu0 0
      %536 = vmatprep.subr.bf16.mxu0 0
      %537 = vmatpush1.bf16.msra.mxu0 0
      %538 = vmatprep.subr.bf16.mxu0 0
      %539 = vmatpush1.bf16.msra.mxu0 0
      %540 = vmatprep.mubr.bf16.mxu0 0
      %541 = vmatmul.mubr.bf16.gmra.mrb[0].mxu0 %v503
      %v542 = vpop.f32.mrb[0].mxu0
      %v543 = vadd.f32 0.0, %v542
      %v544 = vpop.f32.mrb[0].mxu0
      %v545 = vpop.f32.mrb[0].mxu0
      %v546 = vadd.f32 0.0, %v545
      %v547 = vpop.f32.mrb[0].mxu0
      %548 = vdwg.mxu0
      %v549 = vadd.f32 %v490, %v543
      %v550 = vadd.f32 %v491, %v546
      %s551 = scalar_lea.vmem %s217, 40
      %v552 = vld [vmem:[%s551] sm:$0xf]
      %v553 = vld [vmem:[%s551 + $0x4] sm:$0x3]
      %v556 = vunpack.c.l.b16 %v552
      %v557 = vunpack.c.l.b16 %v553
      %v558 = vpack.c.b16 %v557, %v556
      %559 = vrot.lane.b32.xlu0 %v322, 123
      %v560 = vpop.permute.xlu0 %559
      %v562 = vsel %vm256, %v558, 0
      %v565 = vsel %vm260, %v560, 0
      %567 = vmatprep.subr.bf16.mxu0 0
      %568 = vmatpush1.bf16.msra.mxu0 %v565
      %569 = vmatprep.subr.bf16.mxu0 0
      %570 = vmatpush1.bf16.msra.mxu0 0
      %571 = vmatprep.subr.bf16.mxu0 0
      %572 = vmatpush1.bf16.msra.mxu0 0
      %573 = vmatprep.subr.bf16.mxu0 0
      %574 = vmatpush1.bf16.msra.mxu0 0
      %575 = vmatprep.subr.bf16.mxu0 0
      %576 = vmatpush1.bf16.msra.mxu0 0
      %577 = vmatprep.subr.bf16.mxu0 0
      %578 = vmatpush1.bf16.msra.mxu0 0
      %579 = vmatprep.subr.bf16.mxu0 0
      %580 = vmatpush1.bf16.msra.mxu0 0
      %581 = vmatprep.subr.bf16.mxu0 0
      %582 = vmatpush1.bf16.msra.mxu0 0
      %583 = vmatprep.subr.bf16.mxu0 0
      %584 = vmatpush1.bf16.msra.mxu0 0
      %585 = vmatprep.subr.bf16.mxu0 0
      %586 = vmatpush1.bf16.msra.mxu0 0
      %587 = vmatprep.subr.bf16.mxu0 0
      %588 = vmatpush1.bf16.msra.mxu0 0
      %589 = vmatprep.subr.bf16.mxu0 0
      %590 = vmatpush1.bf16.msra.mxu0 0
      %591 = vmatprep.subr.bf16.mxu0 0
      %592 = vmatpush1.bf16.msra.mxu0 0
      %593 = vmatprep.subr.bf16.mxu0 0
      %594 = vmatpush1.bf16.msra.mxu0 0
      %595 = vmatprep.subr.bf16.mxu0 0
      %596 = vmatpush1.bf16.msra.mxu0 0
      %597 = vmatprep.subr.bf16.mxu0 0
      %598 = vmatpush1.bf16.msra.mxu0 0
      %599 = vmatprep.mubr.bf16.mxu0 0
      %600 = vmatmul.mubr.bf16.gmra.mrb[0].mxu0 %v562
      %v601 = vpop.f32.mrb[0].mxu0
      %v602 = vadd.f32 0.0, %v601
      %v603 = vpop.f32.mrb[0].mxu0
      %v604 = vpop.f32.mrb[0].mxu0
      %v605 = vadd.f32 0.0, %v604
      %v606 = vpop.f32.mrb[0].mxu0
      %607 = vdwg.mxu0
      %v608 = vadd.f32 %v549, %v602
      %v609 = vadd.f32 %v550, %v605
      %s610 = scalar_lea.vmem %s217, 48
      %v611 = vld [vmem:[%s610] sm:$0xf]
      %v612 = vld [vmem:[%s610 + $0x4] sm:$0x3]
      %v615 = vunpack.c.l.b16 %v611
      %v616 = vunpack.c.l.b16 %v612
      %v617 = vpack.c.b16 %v616, %v615
      %618 = vrot.lane.b32.xlu0 %v322, 122
      %v619 = vpop.permute.xlu0 %618
      %v621 = vsel %vm256, %v617, 0
      %v624 = vsel %vm260, %v619, 0
      %626 = vmatprep.subr.bf16.mxu0 0
      %627 = vmatpush1.bf16.msra.mxu0 %v624
      %628 = vmatprep.subr.bf16.mxu0 0
      %629 = vmatpush1.bf16.msra.mxu0 0
      %630 = vmatprep.subr.bf16.mxu0 0
      %631 = vmatpush1.bf16.msra.mxu0 0
      %632 = vmatprep.subr.bf16.mxu0 0
      %633 = vmatpush1.bf16.msra.mxu0 0
      %634 = vmatprep.subr.bf16.mxu0 0
      %635 = vmatpush1.bf16.msra.mxu0 0
      %636 = vmatprep.subr.bf16.mxu0 0
      %637 = vmatpush1.bf16.msra.mxu0 0
      %638 = vmatprep.subr.bf16.mxu0 0
      %639 = vmatpush1.bf16.msra.mxu0 0
      %640 = vmatprep.subr.bf16.mxu0 0
      %641 = vmatpush1.bf16.msra.mxu0 0
      %642 = vmatprep.subr.bf16.mxu0 0
      %643 = vmatpush1.bf16.msra.mxu0 0
      %644 = vmatprep.subr.bf16.mxu0 0
      %645 = vmatpush1.bf16.msra.mxu0 0
      %646 = vmatprep.subr.bf16.mxu0 0
      %647 = vmatpush1.bf16.msra.mxu0 0
      %648 = vmatprep.subr.bf16.mxu0 0
      %649 = vmatpush1.bf16.msra.mxu0 0
      %650 = vmatprep.subr.bf16.mxu0 0
      %651 = vmatpush1.bf16.msra.mxu0 0
      %652 = vmatprep.subr.bf16.mxu0 0
      %653 = vmatpush1.bf16.msra.mxu0 0
      %654 = vmatprep.subr.bf16.mxu0 0
      %655 = vmatpush1.bf16.msra.mxu0 0
      %656 = vmatprep.subr.bf16.mxu0 0
      %657 = vmatpush1.bf16.msra.mxu0 0
      %658 = vmatprep.mubr.bf16.mxu0 0
      %659 = vmatmul.mubr.bf16.gmra.mrb[0].mxu0 %v621
      %v660 = vpop.f32.mrb[0].mxu0
      %v661 = vadd.f32 0.0, %v660
      %v662 = vpop.f32.mrb[0].mxu0
      %v663 = vpop.f32.mrb[0].mxu0
      %v664 = vadd.f32 0.0, %v663
      %v665 = vpop.f32.mrb[0].mxu0
      %666 = vdwg.mxu0
      %v667 = vadd.f32 %v608, %v661
      %v668 = vadd.f32 %v609, %v664
      %vm669 = vcmask 130048
      %670 = vst.msk [vmem:[%s233] sm:$0xff] %vm669, %v667
      %vm671 = vcmask 125952
      %672 = vst.msk [vmem:[%s233 + $0x8] sm:$0xf] %vm671, %v668
      %s673 = smul.u32 2, %s19
      %p674 = scmp.lt.s32.totalorder %s18, 1
      %s675 = scalar_select %p674, %s18, 1
      %p676 = scmp.lt.s32.totalorder %s673, 1
      %s677 = scalar_select %p676, %s673, 1
      %s678 = smul.addr %s675, 2
      %s679 = sadd.s32 %s677, %s678
      %s680 = smul.addr %s679, 8
      %s681 = scalar_lea.vmem %s3, %s680
      // Predicated region
      $region33: #{multi_scale_conv.1} parent=31 // pred_check
        %p682 = pneg %p124
      $region34: #{multi_scale_conv.1} parent=31 // pred_check_branch
        %684 = sbr.rel (%p682) target = $region36
      $region35: #{multi_scale_conv.1} parent=31 // pred_region
        %s685 = smul.u32 2, %s19
      $region36: #{multi_scale_conv.1} parent=31 // pred_fallthru
        _
    $region32: #{multi_scale_conv.1} parent=5 // pred_fallthru
      _
    %p686 = scmp.le.s32.totalorder 2, %s9
    // Predicated region
    $region37: #{multi_scale_conv.1} parent=5 // pred_check
      %p687 = pneg %p686
    $region38: #{multi_scale_conv.1} parent=5 // pred_check_branch
      %689 = sbr.rel (%p687) target = $region40
    $region39: #{multi_scale_conv.1} parent=5 // pred_region
      %s690 = ssub.s32 %s9, 2
      // Predicated region
      $region41: #{multi_scale_conv.1} parent=39 // pred_check
        %p691 = pneg %p130
      $region42: #{multi_scale_conv.1} parent=39 // pred_check_branch
        %693 = sbr.rel (%p691) target = $region44
      $region43: #{multi_scale_conv.1} parent=39 // pred_region
        %s694 = smul.u32 2, %s21
        %p695 = scmp.lt.s32.totalorder %s20, 1
        %s696 = scalar_select %p695, %s20, 1
        %p697 = scmp.lt.s32.totalorder %s694, 1
        %s698 = scalar_select %p697, %s694, 1
        %s699 = smul.addr %s696, 2
        %s700 = sadd.s32 %s698, %s699
        %s701 = smul.addr %s700, 8
        %s702 = scalar_lea.vmem %s3, %s701
      $region44: #{multi_scale_conv.1} parent=39 // pred_fallthru
        _
    $region40: #{multi_scale_conv.1} parent=5 // pred_fallthru
      _
  $region6: #{multi_scale_conv.1} parent=0 // loop_footer
    %s13 = sadd.s32 1, %s9
  $region7: #{multi_scale_conv.1} parent=0 // loop_footer_branch
    %8 = sbr.rel target = $region3
  $region8: #{multi_scale_conv.1} parent=0 // loop_exit
    _

</llo_original>
